<compile_context>
chip_gen: v5e
topology: v5e:2x2
jax: 0.10.0
libtpu: 0.0.40
codegen_flags: <defaults>
</compile_context>

<pallas_src>
import numpy as np
import jax
import jax.numpy as jnp
from jax import lax
from jax.experimental import pallas as pl
from jax.experimental.pallas import tpu as pltpu

_LANES = 128
_SUBLANES = 8
_MAX_BLOCK_ROWS = 1024   # (1024, 128) f32 block = 512 KiB per pipeline buffer.


def _cdiv(a: int, b: int) -> int:
    return -(-a // b)


def _round_up(a: int, b: int) -> int:
    return _cdiv(a, b) * b


def _sublane_multiple(dtype) -> int:
    # Native TPU tiling: f32 -> 8 sublanes, bf16 -> 16, int8/fp8 -> 32.
    itemsize = jnp.dtype(dtype).itemsize
    return _SUBLANES * max(1, 4 // itemsize)


def _identity_index_map(i):
    return (i, 0)


def _clamped_index_map(last_block: int):
    def index_map(i):
        return (jnp.minimum(i, last_block), 0)
    return index_map


def _make_sumsq_kernel(meta, n_blocks):
    """meta[k] = (block_rows_k, slab_rows_k, n_blocks_k) for input slab k."""
    n_in = len(meta)

    def kernel(*refs):
        in_refs = refs[:n_in]
        o_ref = refs[n_in]
        acc_refs = refs[n_in + 1:]

        i = pl.program_id(0)

        @pl.when(i == 0)
        def _init():
            for acc in acc_refs:
                acc[...] = jnp.zeros_like(acc)

        for k, (bk, rows_k, nb_k) in enumerate(meta):
            def accumulate(k=k, bk=bk, rows_k=rows_k):
                x = in_refs[k][...].astype(jnp.float32)
                if rows_k % bk != 0:
                    # Partial (Pallas boundary) block: rows past the end of
                    # the slab are undefined -> zero them before squaring.
                    row_idx = i * bk + lax.broadcasted_iota(
                        jnp.int32, (bk, _LANES), 0)
                    x = jnp.where(row_idx < rows_k, x, 0.0)
                acc_refs[k][...] += x * x       # pure VPU, no per-step reduce

            if nb_k == n_blocks:
                accumulate()
            else:
                # Shorter input: its block index is clamped in the index_map
                # (no extra DMA) and accumulation stops once it runs out.
                pl.when(i < nb_k)(accumulate)

        @pl.when(i == pl.num_programs(0) - 1)
        def _finalize():
            for k in range(n_in):
                o_ref[0, k] = jnp.sum(acc_refs[k][...])

    return kernel


def sums_of_squares(*tensors, max_block_rows: int = _MAX_BLOCK_ROWS):
    """sum(t**2) for every tensor, fused into a single Pallas TPU call."""
    slabs = []
    meta = []   # (block_rows, slab_rows, n_blocks) per input
    for t in tensors:
        flat = jnp.ravel(t)
        n = int(flat.shape[0])
        mult = _sublane_multiple(flat.dtype)
        # Rows of a (rows, 128) slab, rounded to the dtype's sublane multiple
        # so the block shape always satisfies TPU tiling constraints.
        rows = _round_up(max(_cdiv(max(n, 1), _LANES), 1), mult)
        pad = rows * _LANES - n
        if pad:
            # Only the small ragged tail is padded; zeros contribute nothing
            # to a sum of squares.  Inputs that are already tile-aligned are
            # reshaped with no copy at all.
            # TODO(synk): a fully copy-free ragged tail would need a manual
            # variable-length DMA; not expressible with a plain BlockSpec.
            flat = jnp.pad(flat, (0, pad))
        slabs.append(flat.reshape(rows, _LANES))

        block_rows = min(max_block_rows, rows)
        block_rows = max(mult, (block_rows // mult) * mult)
        meta.append((block_rows, rows, _cdiv(rows, block_rows)))

    n_in = len(slabs)
    n_blocks = max(nb for _, _, nb in meta)

    in_specs = []
    for block_rows, _, nb_k in meta:
        index_map = (_identity_index_map if nb_k == n_blocks
                     else _clamped_index_map(nb_k - 1))
        in_specs.append(pl.BlockSpec((block_rows, _LANES), index_map))

    out = pl.pallas_call(
        _make_sumsq_kernel(tuple(meta), n_blocks),
        out_shape=jax.ShapeDtypeStruct((1, n_in), jnp.float32),
        grid_spec=pltpu.PrefetchScalarGridSpec(
            num_scalar_prefetch=0,
            grid=(n_blocks,),
            in_specs=in_specs,
            out_specs=pl.BlockSpec((1, n_in), lambda i: (0, 0),
                                   memory_space=pltpu.SMEM),
            scratch_shapes=[pltpu.VMEM((block_rows, _LANES), jnp.float32)
                            for block_rows, _, _ in meta],
        ),
        compiler_params=pltpu.CompilerParams(
            dimension_semantics=("arbitrary",)),
    )(*slabs)
    return tuple(out[0, k] for k in range(n_in))


def rigid_regularizer(rotation_params, translation_params,
                      rotation_weight: float = 0.001,
                      translation_weight: float = 0.001):
    """JAX/Pallas equivalent of RigidRegularizer.forward."""
    # NOTE: a further v7x-only win would split the grid over both TensorCores
    # ((2, n/2) grid, "parallel" leading axis, per-core partial sums); omitted
    # since regularizer tensors are typically tiny and launch-overhead bound.
    total_loss = jnp.float32(0.0)
    info = {}
    use_rot = rotation_weight > 0
    use_trans = translation_weight > 0
    if use_rot and use_trans:
        rotation_loss, translation_loss = sums_of_squares(
            rotation_params, translation_params)
        total_loss = (total_loss
                      + jnp.float32(rotation_weight) * rotation_loss
                      + jnp.float32(translation_weight) * translation_loss)
        info["rotation_loss"] = rotation_loss
        info["translation_loss"] = translation_loss
    elif use_rot:
        (rotation_loss,) = sums_of_squares(rotation_params)
        total_loss = total_loss + jnp.float32(rotation_weight) * rotation_loss
        info["rotation_loss"] = rotation_loss
    elif use_trans:
        (translation_loss,) = sums_of_squares(translation_params)
        total_loss = (total_loss
                      + jnp.float32(translation_weight) * translation_loss)
        info["translation_loss"] = translation_loss
    return total_loss, info


if __name__ == "__main__":
    key = jax.random.PRNGKey(0)
    k_rot, k_trans, k_rot2, k_trans2 = jax.random.split(key, 4)

    # --- Primary example: RigidTransform params (batch=2, clusters=8, 3) ----
    rotation_params = jax.random.normal(k_rot, (2, 8, 3), dtype=jnp.float32)
    translation_params = jax.random.normal(k_trans, (2, 8, 3), dtype=jnp.float32)

    total_loss, info = rigid_regularizer(rotation_params, translation_params,
                                         rotation_weight=0.001,
                                         translation_weight=0.001)
    total_loss = jax.block_until_ready(total_loss)

    ref_rot = jnp.sum(rotation_params.astype(jnp.float32) ** 2)
    ref_trans = jnp.sum(translation_params.astype(jnp.float32) ** 2)
    ref_total = 0.001 * ref_rot + 0.001 * ref_trans

    np.testing.assert_allclose(np.asarray(info["rotation_loss"]),
                               np.asarray(ref_rot), rtol=1e-5)
    np.testing.assert_allclose(np.asarray(info["translation_loss"]),
                               np.asarray(ref_trans), rtol=1e-5)
    np.testing.assert_allclose(np.asarray(total_loss),
                               np.asarray(ref_total), rtol=1e-5)

    # --- Secondary check: unequal sizes, bf16 input, ragged lane tail -------
    rot2 = jax.random.normal(k_rot2, (4, 40, 3), dtype=jnp.float32)
    trans2 = jax.random.normal(k_trans2, (2, 300, 3),
                               dtype=jnp.float32).astype(jnp.bfloat16)
    total2, info2 = rigid_regularizer(rot2, trans2, 0.01, 0.5)
    total2 = jax.block_until_ready(total2)
    ref_rot2 = jnp.sum(rot2.astype(jnp.float32) ** 2)
    ref_trans2 = jnp.sum(trans2.astype(jnp.float32) ** 2)
    np.testing.assert_allclose(np.asarray(info2["rotation_loss"]),
                               np.asarray(ref_rot2), rtol=1e-4)
    np.testing.assert_allclose(np.asarray(info2["translation_loss"]),
                               np.asarray(ref_trans2), rtol=1e-4)
    np.testing.assert_allclose(np.asarray(total2),
                               np.asarray(0.01 * ref_rot2 + 0.5 * ref_trans2),
                               rtol=1e-4)

    # --- Multi-block path check: small max_block_rows forces >1 grid step,
    #     a masked partial boundary block, and a clamped shorter input -------
    big = jax.random.normal(k_rot2, (2, 512, 3), dtype=jnp.float32)    # 3072 -> 24 rows
    small = jax.random.normal(k_trans2, (4, 40, 3), dtype=jnp.float32)  # 480 -> 8 rows
    s_big, s_small = sums_of_squares(big, small, max_block_rows=16)
    jax.block_until_ready(s_big)
    np.testing.assert_allclose(np.asarray(s_big),
                               np.asarray(jnp.sum(big.astype(jnp.float32) ** 2)),
                               rtol=1e-4)
    np.testing.assert_allclose(np.asarray(s_small),
                               np.asarray(jnp.sum(small.astype(jnp.float32) ** 2)),
                               rtol=1e-4)

    print("KERNEL_OK")
</pallas_src>

<mosaic_0001>
module attributes {stable_mosaic.version = 11 : i64} {
  func.func @kernel(%arg0: i32, %arg1: memref<8x128xf32, #tpu.memory_space<vmem>>, %arg2: memref<8x128xf32, #tpu.memory_space<vmem>>, %arg3: memref<1x2xf32, #tpu.memory_space<smem>>, %arg4: memref<8x128xf32, #tpu.memory_space<vmem>>, %arg5: memref<8x128xf32, #tpu.memory_space<vmem>>) attributes {dimension_semantics = [#tpu.dimension_semantics<arbitrary>], iteration_bounds = array<i64: 1>, scalar_prefetch = 0 : i64, scratch_operands = 2 : i64, tpu.core_type = #tpu.core_type<tc>, window_params = [{transform_indices = @transform_0, window_bounds = array<i64: 8, 128>}, {transform_indices = @transform_1, window_bounds = array<i64: 8, 128>}, {transform_indices = @transform_2, window_bounds = array<i64: 1, 2>}]} {
    %c0_i32 = arith.constant 0 : i32
    %0 = arith.cmpi eq, %arg0, %c0_i32 : i32
    %1 = arith.extui %0 : i1 to i32
    %c0_i32_0 = arith.constant 0 : i32
    %2 = arith.cmpi ne, %1, %c0_i32_0 : i32
    scf.if %2 {
      %cst = arith.constant 0.000000e+00 : f32
      %16 = vector.broadcast %cst : f32 to vector<8x128xf32>
      %c0_14 = arith.constant 0 : index
      %c0_15 = arith.constant 0 : index
      %17 = vector.load %arg4[%c0_14, %c0_15] : memref<8x128xf32, #tpu.memory_space<vmem>>, vector<8x128xf32>
      tpu.vector_store %arg4[%c0_14, %c0_15], %16 {strides = array<i32>} : memref<8x128xf32, #tpu.memory_space<vmem>>, vector<8x128xf32>,
      %cst_16 = arith.constant 0.000000e+00 : f32
      %18 = vector.broadcast %cst_16 : f32 to vector<8x128xf32>
      %c0_17 = arith.constant 0 : index
      %c0_18 = arith.constant 0 : index
      %19 = vector.load %arg5[%c0_17, %c0_18] : memref<8x128xf32, #tpu.memory_space<vmem>>, vector<8x128xf32>
      tpu.vector_store %arg5[%c0_17, %c0_18], %18 {strides = array<i32>} : memref<8x128xf32, #tpu.memory_space<vmem>>, vector<8x128xf32>,
    } else {
    }
    %c0 = arith.constant 0 : index
    %c0_1 = arith.constant 0 : index
    %3 = vector.load %arg1[%c0, %c0_1] : memref<8x128xf32, #tpu.memory_space<vmem>>, vector<8x128xf32>
    %c0_2 = arith.constant 0 : index
    %c0_3 = arith.constant 0 : index
    %4 = vector.load %arg4[%c0_2, %c0_3] : memref<8x128xf32, #tpu.memory_space<vmem>>, vector<8x128xf32>
    %5 = arith.mulf %3, %3 : vector<8x128xf32>
    %6 = arith.addf %4, %5 : vector<8x128xf32>
    %c0_4 = arith.constant 0 : index
    %c0_5 = arith.constant 0 : index
    %7 = vector.load %arg4[%c0_4, %c0_5] : memref<8x128xf32, #tpu.memory_space<vmem>>, vector<8x128xf32>
    tpu.vector_store %arg4[%c0_4, %c0_5], %6 {strides = array<i32>} : memref<8x128xf32, #tpu.memory_space<vmem>>, vector<8x128xf32>,
    %c0_6 = arith.constant 0 : index
    %c0_7 = arith.constant 0 : index
    %8 = vector.load %arg2[%c0_6, %c0_7] : memref<8x128xf32, #tpu.memory_space<vmem>>, vector<8x128xf32>
    %c0_8 = arith.constant 0 : index
    %c0_9 = arith.constant 0 : index
    %9 = vector.load %arg5[%c0_8, %c0_9] : memref<8x128xf32, #tpu.memory_space<vmem>>, vector<8x128xf32>
    %10 = arith.mulf %8, %8 : vector<8x128xf32>
    %11 = arith.addf %9, %10 : vector<8x128xf32>
    %c0_10 = arith.constant 0 : index
    %c0_11 = arith.constant 0 : index
    %12 = vector.load %arg5[%c0_10, %c0_11] : memref<8x128xf32, #tpu.memory_space<vmem>>, vector<8x128xf32>
    tpu.vector_store %arg5[%c0_10, %c0_11], %11 {strides = array<i32>} : memref<8x128xf32, #tpu.memory_space<vmem>>, vector<8x128xf32>,
    %c0_i32_12 = arith.constant 0 : i32
    %13 = arith.cmpi eq, %arg0, %c0_i32_12 : i32
    %14 = arith.extui %13 : i1 to i32
    %c0_i32_13 = arith.constant 0 : i32
    %15 = arith.cmpi ne, %14, %c0_i32_13 : i32
    scf.if %15 {
      %c0_14 = arith.constant 0 : index
      %c0_15 = arith.constant 0 : index
      %16 = vector.load %arg4[%c0_14, %c0_15] : memref<8x128xf32, #tpu.memory_space<vmem>>, vector<8x128xf32>
      %17 = vector.shape_cast %16 : vector<8x128xf32> to vector<1x8x128xf32>
      %cst = arith.constant dense<0.000000e+00> : vector<1xf32>
      %18 = vector.multi_reduction <add>, %17, %cst [1, 2] : vector<1x8x128xf32> to vector<1xf32>
      %19 = vector.shape_cast %18 : vector<1xf32> to vector<1x1x1xf32>
      %20 = vector.extract %19[0, 0, 0] : f32 from vector<1x1x1xf32>
      %c0_16 = arith.constant 0 : index
      %c0_17 = arith.constant 0 : index
      %21 = memref.load %arg3[%c0_16, %c0_17] : memref<1x2xf32, #tpu.memory_space<smem>>
      memref.store %20, %arg3[%c0_16, %c0_17] : memref<1x2xf32, #tpu.memory_space<smem>>
      %c0_18 = arith.constant 0 : index
      %c0_19 = arith.constant 0 : index
      %22 = vector.load %arg5[%c0_18, %c0_19] : memref<8x128xf32, #tpu.memory_space<vmem>>, vector<8x128xf32>
      %23 = vector.shape_cast %22 : vector<8x128xf32> to vector<1x8x128xf32>
      %cst_20 = arith.constant dense<0.000000e+00> : vector<1xf32>
      %24 = vector.multi_reduction <add>, %23, %cst_20 [1, 2] : vector<1x8x128xf32> to vector<1xf32>
      %25 = vector.shape_cast %24 : vector<1xf32> to vector<1x1x1xf32>
      %26 = vector.extract %25[0, 0, 0] : f32 from vector<1x1x1xf32>
      %c0_21 = arith.constant 0 : index
      %c1 = arith.constant 1 : index
      %27 = memref.load %arg3[%c0_21, %c1] : memref<1x2xf32, #tpu.memory_space<smem>>
      memref.store %26, %arg3[%c0_21, %c1] : memref<1x2xf32, #tpu.memory_space<smem>>
    } else {
    }
    return
  }
  func.func @transform_0(%arg0: i32) -> (i32, i32) {
    %c0_i32 = arith.constant 0 : i32
    %c0_i32_0 = arith.constant 0 : i32
    return %arg0, %c0_i32 : i32, i32
  }
  func.func @transform_1(%arg0: i32) -> (i32, i32) {
    %c0_i32 = arith.constant 0 : i32
    %c0_i32_0 = arith.constant 0 : i32
    return %arg0, %c0_i32 : i32, i32
  }
  func.func @transform_2(%arg0: i32) -> (i32, i32) {
    %c0_i32 = arith.constant 0 : i32
    %c0_i32_0 = arith.constant 0 : i32
    %c0_i32_1 = arith.constant 0 : i32
    return %c0_i32, %c0_i32_0 : i32, i32
  }
}

</mosaic_0001>

<llo_original>
// kernel: tpu_custom_call.1
$region0: #{tpu_custom_call.1}
  #allocation0 [shape = 'u32[]', space=smem, size = 0x4, offset = 0x4, fixed_abs, tag = 'smem constant byte address 0x4 - core index']
  #allocation1 [shape = 'u32[72,128]{1,0:T(1,128)}', space=vmem, size = 0x9000, scoped, tag = 'internal scratch']
  #allocation2 [shape = 'f32[8,128]{1,0:T(8,128)}', space=vmem, size = 0x1000, scoped, tag = 'scratch operand']
  #allocation3 [shape = 'f32[8,128]{1,0:T(8,128)}', space=vmem, size = 0x1000, scoped, tag = 'scratch operand']
  %s0 = inlined_call_operand.hbm [shape: f32[8,128], index: 0, kind: input, shape index: {}]
  %s1 = inlined_call_operand.hbm [shape: f32[8,128], index: 1, kind: input, shape index: {}]
  %s2 = inlined_call_operand.hbm [shape: f32[1,2], index: 2, kind: output, shape index: {}]
  %s3 = sld [smem:[#allocation0]]
  $region34: #{tpu_custom_call.1} parent=0
    _
  %s5 = ssub.s32 1, %s3
  %s6 = scalar_select 0, %s5, %s3
  $region1: #{tpu_custom_call.1} parent=0
    #allocation4 [shape = 'u8[4096]{0}', space=vmem, size = 0x1000, scoped, tag = 'input window, operand 0, single buffered']
    #allocation5 [shape = 's32[1]{0}', space=sflag, size = 0x4, scoped, tag = 'scoped memory for tpu_custom_call.1']
    #allocation6 [shape = 's32[1]{0}', space=sflag, size = 0x4, scoped, tag = 'scoped memory for tpu_custom_call.1']
    #allocation7 [shape = 'u8[4096]{0}', space=vmem, size = 0x1000, scoped, tag = 'input window, operand 1, single buffered']
    #allocation8 [shape = 's32[1]{0}', space=sflag, size = 0x4, scoped, tag = 'scoped memory for tpu_custom_call.1']
    #allocation9 [shape = 'u8[512]{0}', space=smem, size = 0x200, scoped, tag = 'output window, operand 0, single buffered']
    %7 = vsyncpa [#allocation5], 0
    %8 = vsyncpa [#allocation8], 0
    %9 = vsyncpa [#allocation6], 0
    // Predicated region
    $region2: #{tpu_custom_call.1} parent=1 // pred_check
      _
    $region3: #{tpu_custom_call.1} parent=1 // pred_check_branch
      %11 = sbr.rel (0) target = $region5
    $region4: #{tpu_custom_call.1} parent=1 // pred_region
      %13 = vsyncadd [#allocation5], 0
      %s15 = sshll.u32 %s0, 4
      %s16 = int_to_ptr.hbm [resolvable:$true] %s15
      %s17 = sshll.u32 [#allocation4], 4
      %s18 = int_to_ptr.vmem [resolvable:$true] %s17
      %20 = dma.hbm_to_vmem [thread:$0]  %s16, 128, %s18, [#allocation5]
    $region5: #{tpu_custom_call.1} parent=1 // pred_fallthru
      _
    // Predicated region
    $region6: #{tpu_custom_call.1} parent=1 // pred_check
      _
    $region7: #{tpu_custom_call.1} parent=1 // pred_check_branch
      %22 = sbr.rel (0) target = $region9
    $region8: #{tpu_custom_call.1} parent=1 // pred_region
      %24 = vsyncadd [#allocation8], 0
      %s26 = sshll.u32 %s1, 4
      %s27 = int_to_ptr.hbm [resolvable:$true] %s26
      %s28 = sshll.u32 [#allocation7], 4
      %s29 = int_to_ptr.vmem [resolvable:$true] %s28
      %31 = dma.hbm_to_vmem [thread:$0]  %s27, 128, %s29, [#allocation8]
    $region9: #{tpu_custom_call.1} parent=1 // pred_fallthru
      _
    // Predicated region
    $region10: #{tpu_custom_call.1} parent=1 // pred_check
      _
    $region11: #{tpu_custom_call.1} parent=1 // pred_check_branch
      %33 = sbr.rel (0) target = $region13
    $region12: #{tpu_custom_call.1} parent=1 // pred_region
      %35 = dma.done [#allocation5], 128
    $region13: #{tpu_custom_call.1} parent=1 // pred_fallthru
      _
    // Predicated region
    $region14: #{tpu_custom_call.1} parent=1 // pred_check
      _
    $region15: #{tpu_custom_call.1} parent=1 // pred_check_branch
      %37 = sbr.rel (0) target = $region17
    $region16: #{tpu_custom_call.1} parent=1 // pred_region
      %39 = dma.done [#allocation8], 128
    $region17: #{tpu_custom_call.1} parent=1 // pred_fallthru
      _
    %p40 = scmp.eq.s32.totalorder 0, 0
    // Predicated region
    $region18: #{tpu_custom_call.1} parent=1 // pred_check
      %p41 = pneg %p40
    $region19: #{tpu_custom_call.1} parent=1 // pred_check_branch
      %43 = sbr.rel (%p41) target = $region21
    $region20: #{tpu_custom_call.1} parent=1 // pred_region
      %44 = vst [vmem:[#allocation2] sm:$0xff] 0.0
      %45 = vst [vmem:[#allocation3] sm:$0xff] 0.0
    $region21: #{tpu_custom_call.1} parent=1 // pred_fallthru
      _
    %v46 = vld [vmem:[#allocation4] sm:$0xff]
    %v47 = vld [vmem:[#allocation2] sm:$0xff]
    %v48 = vmul.f32 %v46, %v46
    %v49 = vadd.f32 %v47, %v48
    %50 = vst [vmem:[#allocation2] sm:$0xff] %v49
    %v51 = vld [vmem:[#allocation7] sm:$0xff]
    %v52 = vld [vmem:[#allocation3] sm:$0xff]
    %v53 = vmul.f32 %v51, %v51
    %v54 = vadd.f32 %v52, %v53
    %55 = vst [vmem:[#allocation3] sm:$0xff] %v54
    // Predicated region
    $region22: #{tpu_custom_call.1} parent=1 // pred_check
      %p56 = pneg %p40
    $region23: #{tpu_custom_call.1} parent=1 // pred_check_branch
      %58 = sbr.rel (%p56) target = $region25
    $region24: #{tpu_custom_call.1} parent=1 // pred_region
      %v59 = vld [vmem:[#allocation2] sm:$0xff]
      %60 = vadd.xlane.f32.xlu0 %v59
      %v61 = vpop.xlane.xlu0 %60
      %v62 = vrot.slane %v61, 4
      %v63 = vadd.f32 %v61, %v62
      %v64 = vrot.slane %v63, 2
      %v65 = vadd.f32 %v63, %v64
      %v66 = vrot.slane %v65, 1
      %v67 = vadd.f32 %v65, %v66
      %s68 = vtos %v67
      %s69 = scalar_lea.smem [#allocation9], 0
      %70 = sst [smem:[%s69]] %s68
      %v71 = vld [vmem:[#allocation3] sm:$0xff]
      %72 = vadd.xlane.f32.xlu0 %v71
      %v73 = vpop.xlane.xlu0 %72
      %v74 = vrot.slane %v73, 4
      %v75 = vadd.f32 %v73, %v74
      %v76 = vrot.slane %v75, 2
      %v77 = vadd.f32 %v75, %v76
      %v78 = vrot.slane %v77, 1
      %v79 = vadd.f32 %v77, %v78
      %s80 = vtos %v79
      %s81 = scalar_lea.smem [#allocation9], 1
      %82 = sst [smem:[%s81]] %s80
    $region25: #{tpu_custom_call.1} parent=1 // pred_fallthru
      _
    // Predicated region
    $region26: #{tpu_custom_call.1} parent=1 // pred_check
      _
    $region27: #{tpu_custom_call.1} parent=1 // pred_check_branch
      %84 = sbr.rel (0) target = $region29
    $region28: #{tpu_custom_call.1} parent=1 // pred_region
      %86 = vsyncadd [#allocation6], 0
      %s88 = sshll.u32 %s2, 4
      %s89 = int_to_ptr.hbm [resolvable:$true] %s88
      %91 = dma.smem_to_hbm [#allocation9], 16, %s89, [#allocation6]
    $region29: #{tpu_custom_call.1} parent=1 // pred_fallthru
      _
    // Predicated region
    $region30: #{tpu_custom_call.1} parent=1 // pred_check
      _
    $region31: #{tpu_custom_call.1} parent=1 // pred_check_branch
      %93 = sbr.rel (0) target = $region33
    $region32: #{tpu_custom_call.1} parent=1 // pred_region
      %95 = dma.done [#allocation6], 16
    $region33: #{tpu_custom_call.1} parent=1 // pred_fallthru
      _
    %96 = sfence
    %97 = vsyncpa [#allocation5], 1
    %98 = vsyncpa [#allocation8], 1
    %99 = vsyncpa [#allocation6], 1

</llo_original>
